<compile_context>
chip_gen: v7x
topology: tpu7x:2x2x1
jax: 0.10.0
libtpu: 0.0.40
codegen_flags: <defaults>
</compile_context>

<pallas_src>
import functools

import jax
import jax.numpy as jnp
from jax.experimental import pallas as pl
from jax.experimental.pallas import tpu as pltpu

_LANE = 128
_SUBLANE = 8


def _round_up(x: int, m: int) -> int:
    return ((x + m - 1) // m) * m


# ---------------------------------------------------------------------------
# Kernel
# ---------------------------------------------------------------------------
def _perturbation_kernel(s_ref, a_ref,
                         w1s_ref, w1a_ref, b1_ref,
                         w2_ref, b2_ref,
                         w3_ref, b3_ref,
                         o_ref,
                         *, max_perturbation: float):
    # Activations arrive f32 at their natural widths; cast to bf16 for the MXU in-kernel
    # (VPU work that hides under the matmuls — no wrapper-side cast pass).
    s = s_ref[...].astype(jnp.bfloat16)                 # [tb, S]
    a_f32 = a_ref[...]                                  # [tb, A] (narrow, no lane padding)
    a = a_f32.astype(jnp.bfloat16)

    # Fused concat: first matmul split across the [state | action] halves of w1.
    h1 = (jnp.dot(s, w1s_ref[...], preferred_element_type=jnp.float32)
          + jnp.dot(a, w1a_ref[...], preferred_element_type=jnp.float32)
          + b1_ref[...])
    h1 = jnp.maximum(h1, 0.0).astype(jnp.bfloat16)      # ReLU in f32, bf16 into MXU

    h2 = jnp.dot(h1, w2_ref[...], preferred_element_type=jnp.float32) + b2_ref[...]
    h2 = jnp.maximum(h2, 0.0).astype(jnp.bfloat16)

    p = jnp.dot(h2, w3_ref[...], preferred_element_type=jnp.float32) + b3_ref[...]
    p = jnp.tanh(p) * max_perturbation                  # EUP tanh, f32

    o_ref[...] = jnp.clip(a_f32 + p, -1.0, 1.0)         # narrow [tb, A] f32 store


# ---------------------------------------------------------------------------
# Parameter preparation (split / pad hidden width / cast) — once per network
# ---------------------------------------------------------------------------
def prepare_params(params, state_dim, action_dim, hidden_dim, lane_multiple=_LANE):
    """Split w1 at the concat boundary; zero-pad only the *hidden* width.

    lane_multiple=128 is MXU-native on every generation; use 256 on v6e/v7x when
    hidden_dim > 128 and the kernel is compute-bound (irrelevant while HBM-bound).
    Action/output widths are left at their natural size (narrow HBM I/O)."""
    w1, b1, w2, b2, w3, b3 = params
    h_pad = _round_up(hidden_dim, lane_multiple)

    def pad2(x, rows, cols):
        out = jnp.zeros((rows, cols), x.dtype)
        return out.at[:x.shape[0], :x.shape[1]].set(x)

    w1s = pad2(w1[:state_dim], state_dim, h_pad).astype(jnp.bfloat16)    # [S,  H_pad]
    w1a = pad2(w1[state_dim:], action_dim, h_pad).astype(jnp.bfloat16)   # [A,  H_pad]
    b1p = pad2(b1, 1, h_pad).astype(jnp.float32)
    w2p = pad2(w2, h_pad, h_pad).astype(jnp.bfloat16)                    # [H_pad, H_pad]
    b2p = pad2(b2, 1, h_pad).astype(jnp.float32)
    w3p = pad2(w3, h_pad, action_dim).astype(jnp.bfloat16)               # [H_pad, A]
    b3p = b3.astype(jnp.float32).reshape(1, action_dim)
    return (w1s, w1a, b1p, w2p, b2p, w3p, b3p)


# ---------------------------------------------------------------------------
# VMEM / tile sizing
# ---------------------------------------------------------------------------
def _vmem_limit_bytes() -> int:
    """~3/4 of per-core VMEM: ~48 MiB on v7x (64 MiB), ~96 MiB on v5e/v6e (128 MiB)."""
    try:
        cap = int(pltpu.get_tpu_info().vmem_capacity_bytes)
    except Exception:
        cap = 64 * 1024 * 1024          # assume the smallest (v7x per-TC) if query fails
    return max(32 * 1024 * 1024, min((cap * 3) // 4, 96 * 1024 * 1024))


def _choose_batch_tile(B, tile_b, S, A, h_pad, vmem_limit, single_buffer_weights):
    """Largest batch tile that fits the VMEM budget, >= 2 grid steps for megacore."""
    wbuf = 1 if single_buffer_weights else 2
    weight_bytes = wbuf * (2 * (S * h_pad + A * h_pad + h_pad * h_pad + h_pad * A)
                           + 4 * (2 * h_pad + A))
    # double-buffered f32 state/action/out per row + f32+bf16 hidden intermediates (h1, h2)
    per_row = 2 * 4 * (S + 2 * A) + 2 * 6 * h_pad
    budget = vmem_limit - weight_bytes - (4 << 20)       # slack for Mosaic scratch
    max_rows = max(_SUBLANE, budget // per_row)

    if B <= 16:
        return B                         # single tile; block dim == full dim is always legal
    tb = min(tile_b, max_rows)
    # Keep >= 2 grid steps so ("parallel",) can actually feed both TensorCores on v7x.
    tb = min(tb, _round_up(pl.cdiv(B, 2), _SUBLANE))
    tb = max(16, (tb // _SUBLANE) * _SUBLANE)            # multiple of 8, >= 16 rows
    return tb


# ---------------------------------------------------------------------------
# Forward wrapper
# ---------------------------------------------------------------------------
def perturbation_network_forward(state, action, prepared_params,
                                 max_perturbation=0.05, tile_b=2048):
    """state: [B, state_dim] f32, action: [B, action_dim] f32 -> [B, action_dim] f32."""
    w1s, w1a, b1, w2, b2, w3, b3 = prepared_params
    B, S = state.shape
    _, A = action.shape
    h_pad = w2.shape[0]

    state = state.astype(jnp.float32)
    action = action.astype(jnp.float32)
    vmem_limit = _vmem_limit_bytes()

    kernel = functools.partial(_perturbation_kernel,
                               max_perturbation=float(max_perturbation))

    def call(single_buffer_weights: bool):
        tb = _choose_batch_tile(B, tile_b, S, A, h_pad, vmem_limit, single_buffer_weights)
        n_tiles = pl.cdiv(B, tb)         # ragged tail handled by Pallas masked stores

        def resident(shape):
            # Same block every grid step -> stays resident in VMEM across the grid.
            if single_buffer_weights:
                return pl.BlockSpec(shape, lambda i: (0, 0), pipeline_mode=pl.Buffered(1))
            return pl.BlockSpec(shape, lambda i: (0, 0))

        return pl.pallas_call(
            kernel,
            out_shape=jax.ShapeDtypeStruct((B, A), jnp.float32),
            grid=(n_tiles,),
            in_specs=[
                pl.BlockSpec((tb, S), lambda i: (i, 0)),     # state tile (f32, natural width)
                pl.BlockSpec((tb, A), lambda i: (i, 0)),     # action tile (f32, narrow)
                resident((S, h_pad)),                        # w1 (state part)
                resident((A, h_pad)),                        # w1 (action part)
                resident((1, h_pad)),                        # b1
                resident((h_pad, h_pad)),                    # w2
                resident((1, h_pad)),                        # b2
                resident((h_pad, A)),                        # w3
                resident((1, A)),                            # b3
            ],
            out_specs=pl.BlockSpec((tb, A), lambda i: (i, 0)),
            compiler_params=pltpu.CompilerParams(
                dimension_semantics=("parallel",),           # shard batch across TCs (v7x)
                vmem_limit_bytes=vmem_limit,
            ),
        )(state, action, w1s, w1a, b1, w2, b2, w3, b3)

    try:
        return call(single_buffer_weights=True)
    except Exception:
        # pl.Buffered(1) unsupported in this build -> default double-buffered weights.
        return call(single_buffer_weights=False)


# ---------------------------------------------------------------------------
# Init + reference
# ---------------------------------------------------------------------------
def init_params(key, state_dim, action_dim, hidden_dim):
    """PyTorch-Linear-like uniform init, weights stored [in, out]."""
    def linear(k, fan_in, fan_out):
        kw, kb = jax.random.split(k)
        bound = 1.0 / jnp.sqrt(fan_in)
        w = jax.random.uniform(kw, (fan_in, fan_out), jnp.float32, -bound, bound)
        b = jax.random.uniform(kb, (1, fan_out), jnp.float32, -bound, bound)
        return w, b

    k1, k2, k3 = jax.random.split(key, 3)
    w1, b1 = linear(k1, state_dim + action_dim, hidden_dim)
    w2, b2 = linear(k2, hidden_dim, hidden_dim)
    w3, b3 = linear(k3, hidden_dim, action_dim)
    return (w1, b1, w2, b2, w3, b3)


def _reference(state, action, params, max_perturbation=0.05):
    """Same math, same bf16-operand / f32-accumulate precision, plain XLA."""
    w1, b1, w2, b2, w3, b3 = params
    bf = jnp.bfloat16
    x = jnp.concatenate([state.astype(bf), action.astype(bf)], axis=1)
    h = jnp.maximum(
        jnp.dot(x, w1.astype(bf), preferred_element_type=jnp.float32) + b1, 0.0)
    h = jnp.maximum(
        jnp.dot(h.astype(bf), w2.astype(bf), preferred_element_type=jnp.float32) + b2, 0.0)
    p = jnp.tanh(
        jnp.dot(h.astype(bf), w3.astype(bf), preferred_element_type=jnp.float32) + b3
    ) * max_perturbation
    return jnp.clip(action + p, -1.0, 1.0)


if __name__ == "__main__":
    state_dim, action_dim, hidden_dim, batch = 16, 8, 32, 8
    max_perturbation = 0.05

    key = jax.random.PRNGKey(0)
    kp, ks, ka = jax.random.split(key, 3)
    params = init_params(kp, state_dim, action_dim, hidden_dim)
    prepared = prepare_params(params, state_dim, action_dim, hidden_dim)

    state = jax.random.normal(ks, (batch, state_dim), jnp.float32)
    action = jnp.tanh(jax.random.normal(ka, (batch, action_dim), jnp.float32))

    out = perturbation_network_forward(state, action, prepared, max_perturbation)
    out = jax.block_until_ready(out)

    ref = _reference(state, action, params, max_perturbation)
    assert out.shape == (batch, action_dim)
    err = float(jnp.max(jnp.abs(out - ref)))
    assert jnp.allclose(out, ref, atol=1e-3, rtol=1e-3), f"max abs err {err}"

    print("KERNEL_OK")
</pallas_src>

<mosaic_0001>
module attributes {stable_mosaic.version = 11 : i64} {
  func.func @_perturbation_kernel(%arg0: i32, %arg1: memref<8x16xf32, #tpu.memory_space<vmem>>, %arg2: memref<8x8xf32, #tpu.memory_space<vmem>>, %arg3: memref<16x128xbf16, #tpu.memory_space<vmem>>, %arg4: memref<8x128xbf16, #tpu.memory_space<vmem>>, %arg5: memref<1x128xf32, #tpu.memory_space<vmem>>, %arg6: memref<128x128xbf16, #tpu.memory_space<vmem>>, %arg7: memref<1x128xf32, #tpu.memory_space<vmem>>, %arg8: memref<128x8xbf16, #tpu.memory_space<vmem>>, %arg9: memref<1x8xf32, #tpu.memory_space<vmem>>, %arg10: memref<8x8xf32, #tpu.memory_space<vmem>>) attributes {dimension_semantics = [#tpu.dimension_semantics<parallel>], iteration_bounds = array<i64: 1>, scalar_prefetch = 0 : i64, scratch_operands = 0 : i64, tpu.core_type = #tpu.core_type<tc>, window_params = [{transform_indices = @transform_0, window_bounds = array<i64: 8, 16>}, {transform_indices = @transform_1, window_bounds = array<i64: 8, 8>}, {pipeline_mode = #tpu.pipeline_mode<synchronous>, transform_indices = @transform_2, window_bounds = array<i64: 16, 128>}, {pipeline_mode = #tpu.pipeline_mode<synchronous>, transform_indices = @transform_3, window_bounds = array<i64: 8, 128>}, {pipeline_mode = #tpu.pipeline_mode<synchronous>, transform_indices = @transform_4, window_bounds = array<i64: 1, 128>}, {pipeline_mode = #tpu.pipeline_mode<synchronous>, transform_indices = @transform_5, window_bounds = array<i64: 128, 128>}, {pipeline_mode = #tpu.pipeline_mode<synchronous>, transform_indices = @transform_6, window_bounds = array<i64: 1, 128>}, {pipeline_mode = #tpu.pipeline_mode<synchronous>, transform_indices = @transform_7, window_bounds = array<i64: 128, 8>}, {pipeline_mode = #tpu.pipeline_mode<synchronous>, transform_indices = @transform_8, window_bounds = array<i64: 1, 8>}, {transform_indices = @transform_9, window_bounds = array<i64: 8, 8>}]} {
    %c0 = arith.constant 0 : index
    %c0_0 = arith.constant 0 : index
    %0 = vector.load %arg1[%c0, %c0_0] : memref<8x16xf32, #tpu.memory_space<vmem>>, vector<8x16xf32>
    %1 = arith.truncf %0 : vector<8x16xf32> to vector<8x16xbf16>
    %c0_1 = arith.constant 0 : index
    %c0_2 = arith.constant 0 : index
    %2 = vector.load %arg2[%c0_1, %c0_2] : memref<8x8xf32, #tpu.memory_space<vmem>>, vector<8x8xf32>
    %3 = arith.truncf %2 : vector<8x8xf32> to vector<8x8xbf16>
    %c0_3 = arith.constant 0 : index
    %c0_4 = arith.constant 0 : index
    %4 = vector.load %arg3[%c0_3, %c0_4] : memref<16x128xbf16, #tpu.memory_space<vmem>>, vector<16x128xbf16>
    %cst = arith.constant dense<0.000000e+00> : vector<8x128xf32>
    %5 = tpu.matmul %1, %4, %cst {dimension_numbers = #tpu.dot_dimension_numbers<[1], [0], [0], [1], [0, 0, 1, 1], [], []>} : vector<8x16xbf16>, vector<16x128xbf16>, vector<8x128xf32> -> vector<8x128xf32>
    %c0_5 = arith.constant 0 : index
    %c0_6 = arith.constant 0 : index
    %6 = vector.load %arg4[%c0_5, %c0_6] : memref<8x128xbf16, #tpu.memory_space<vmem>>, vector<8x128xbf16>
    %cst_7 = arith.constant dense<0.000000e+00> : vector<8x128xf32>
    %7 = tpu.matmul %3, %6, %cst_7 {dimension_numbers = #tpu.dot_dimension_numbers<[1], [0], [0], [1], [0, 0, 1, 1], [], []>} : vector<8x8xbf16>, vector<8x128xbf16>, vector<8x128xf32> -> vector<8x128xf32>
    %8 = arith.addf %5, %7 : vector<8x128xf32>
    %c0_8 = arith.constant 0 : index
    %c0_9 = arith.constant 0 : index
    %9 = vector.load %arg5[%c0_8, %c0_9] : memref<1x128xf32, #tpu.memory_space<vmem>>, vector<1x128xf32>
    %10 = vector.broadcast %9 : vector<1x128xf32> to vector<8x128xf32>
    %11 = arith.addf %8, %10 : vector<8x128xf32>
    %cst_10 = arith.constant 0.000000e+00 : f32
    %12 = vector.broadcast %cst_10 : f32 to vector<8x128xf32>
    %13 = arith.maximumf %11, %12 : vector<8x128xf32>
    %14 = arith.truncf %13 : vector<8x128xf32> to vector<8x128xbf16>
    %c0_11 = arith.constant 0 : index
    %c0_12 = arith.constant 0 : index
    %15 = vector.load %arg6[%c0_11, %c0_12] : memref<128x128xbf16, #tpu.memory_space<vmem>>, vector<128x128xbf16>
    %cst_13 = arith.constant dense<0.000000e+00> : vector<8x128xf32>
    %16 = tpu.matmul %14, %15, %cst_13 {dimension_numbers = #tpu.dot_dimension_numbers<[1], [0], [0], [1], [0, 0, 1, 1], [], []>} : vector<8x128xbf16>, vector<128x128xbf16>, vector<8x128xf32> -> vector<8x128xf32>
    %c0_14 = arith.constant 0 : index
    %c0_15 = arith.constant 0 : index
    %17 = vector.load %arg7[%c0_14, %c0_15] : memref<1x128xf32, #tpu.memory_space<vmem>>, vector<1x128xf32>
    %18 = vector.broadcast %17 : vector<1x128xf32> to vector<8x128xf32>
    %19 = arith.addf %16, %18 : vector<8x128xf32>
    %cst_16 = arith.constant 0.000000e+00 : f32
    %20 = vector.broadcast %cst_16 : f32 to vector<8x128xf32>
    %21 = arith.maximumf %19, %20 : vector<8x128xf32>
    %22 = arith.truncf %21 : vector<8x128xf32> to vector<8x128xbf16>
    %c0_17 = arith.constant 0 : index
    %c0_18 = arith.constant 0 : index
    %23 = vector.load %arg8[%c0_17, %c0_18] : memref<128x8xbf16, #tpu.memory_space<vmem>>, vector<128x8xbf16>
    %cst_19 = arith.constant dense<0.000000e+00> : vector<8x8xf32>
    %24 = tpu.matmul %22, %23, %cst_19 {dimension_numbers = #tpu.dot_dimension_numbers<[1], [0], [0], [1], [0, 0, 1, 1], [], []>} : vector<8x128xbf16>, vector<128x8xbf16>, vector<8x8xf32> -> vector<8x8xf32>
    %c0_20 = arith.constant 0 : index
    %c0_21 = arith.constant 0 : index
    %25 = vector.load %arg9[%c0_20, %c0_21] : memref<1x8xf32, #tpu.memory_space<vmem>>, vector<1x8xf32>
    %26 = vector.broadcast %25 : vector<1x8xf32> to vector<8x8xf32>
    %27 = arith.addf %24, %26 : vector<8x8xf32>
    %28 = math.tanh %27 : vector<8x8xf32>
    %cst_22 = arith.constant 5.000000e-02 : f32
    %29 = vector.broadcast %cst_22 : f32 to vector<8x8xf32>
    %30 = arith.mulf %28, %29 : vector<8x8xf32>
    %31 = arith.addf %2, %30 : vector<8x8xf32>
    %cst_23 = arith.constant -1.000000e+00 : f32
    %cst_24 = arith.constant 1.000000e+00 : f32
    %32 = vector.broadcast %cst_23 : f32 to vector<8x8xf32>
    %33 = arith.maximumf %32, %31 : vector<8x8xf32>
    %34 = vector.broadcast %cst_24 : f32 to vector<8x8xf32>
    %35 = arith.minimumf %34, %33 : vector<8x8xf32>
    %c0_25 = arith.constant 0 : index
    %c0_26 = arith.constant 0 : index
    %36 = vector.load %arg10[%c0_25, %c0_26] : memref<8x8xf32, #tpu.memory_space<vmem>>, vector<8x8xf32>
    tpu.vector_store %arg10[%c0_25, %c0_26], %35 {strides = array<i32>} : memref<8x8xf32, #tpu.memory_space<vmem>>, vector<8x8xf32>,
    return
  }
  func.func @transform_0(%arg0: i32) -> (i32, i32) {
    %c0_i32 = arith.constant 0 : i32
    %c0_i32_0 = arith.constant 0 : i32
    return %arg0, %c0_i32 : i32, i32
  }
  func.func @transform_1(%arg0: i32) -> (i32, i32) {
    %c0_i32 = arith.constant 0 : i32
    %c0_i32_0 = arith.constant 0 : i32
    return %arg0, %c0_i32 : i32, i32
  }
  func.func @transform_2(%arg0: i32) -> (i32, i32) {
    %c0_i32 = arith.constant 0 : i32
    %c0_i32_0 = arith.constant 0 : i32
    %c0_i32_1 = arith.constant 0 : i32
    return %c0_i32, %c0_i32_0 : i32, i32
  }
  func.func @transform_3(%arg0: i32) -> (i32, i32) {
    %c0_i32 = arith.constant 0 : i32
    %c0_i32_0 = arith.constant 0 : i32
    %c0_i32_1 = arith.constant 0 : i32
    return %c0_i32, %c0_i32_0 : i32, i32
  }
  func.func @transform_4(%arg0: i32) -> (i32, i32) {
    %c0_i32 = arith.constant 0 : i32
    %c0_i32_0 = arith.constant 0 : i32
    %c0_i32_1 = arith.constant 0 : i32
    return %c0_i32, %c0_i32_0 : i32, i32
  }
  func.func @transform_5(%arg0: i32) -> (i32, i32) {
    %c0_i32 = arith.constant 0 : i32
    %c0_i32_0 = arith.constant 0 : i32
    %c0_i32_1 = arith.constant 0 : i32
    return %c0_i32, %c0_i32_0 : i32, i32
  }
  func.func @transform_6(%arg0: i32) -> (i32, i32) {
    %c0_i32 = arith.constant 0 : i32
    %c0_i32_0 = arith.constant 0 : i32
    %c0_i32_1 = arith.constant 0 : i32
    return %c0_i32, %c0_i32_0 : i32, i32
  }
  func.func @transform_7(%arg0: i32) -> (i32, i32) {
    %c0_i32 = arith.constant 0 : i32
    %c0_i32_0 = arith.constant 0 : i32
    %c0_i32_1 = arith.constant 0 : i32
    return %c0_i32, %c0_i32_0 : i32, i32
  }
  func.func @transform_8(%arg0: i32) -> (i32, i32) {
    %c0_i32 = arith.constant 0 : i32
    %c0_i32_0 = arith.constant 0 : i32
    %c0_i32_1 = arith.constant 0 : i32
    return %c0_i32, %c0_i32_0 : i32, i32
  }
  func.func @transform_9(%arg0: i32) -> (i32, i32) {
    %c0_i32 = arith.constant 0 : i32
    %c0_i32_0 = arith.constant 0 : i32
    return %arg0, %c0_i32 : i32, i32
  }
}

module attributes {stable_mosaic.version = 11 : i64} {
  func.func @_perturbation_kernel(%arg0: i32, %arg1: memref<8x16xf32, #tpu.memory_space<vmem>>, %arg2: memref<8x8xf32, #tpu.memory_space<vmem>>, %arg3: memref<16x128xbf16, #tpu.memory_space<vmem>>, %arg4: memref<8x128xbf16, #tpu.memory_space<vmem>>, %arg5: memref<1x128xf32, #tpu.memory_space<vmem>>, %arg6: memref<128x128xbf16, #tpu.memory_space<vmem>>, %arg7: memref<1x128xf32, #tpu.memory_space<vmem>>, %arg8: memref<128x8xbf16, #tpu.memory_space<vmem>>, %arg9: memref<1x8xf32, #tpu.memory_space<vmem>>, %arg10: memref<8x8xf32, #tpu.memory_space<vmem>>) attributes {dimension_semantics = [#tpu.dimension_semantics<parallel>], iteration_bounds = array<i64: 1>, scalar_prefetch = 0 : i64, scratch_operands = 0 : i64, tpu.core_type = #tpu.core_type<tc>, window_params = [{transform_indices = @transform_0, window_bounds = array<i64: 8, 16>}, {transform_indices = @transform_1, window_bounds = array<i64: 8, 8>}, {pipeline_mode = #tpu.pipeline_mode<synchronous>, transform_indices = @transform_2, window_bounds = array<i64: 16, 128>}, {pipeline_mode = #tpu.pipeline_mode<synchronous>, transform_indices = @transform_3, window_bounds = array<i64: 8, 128>}, {pipeline_mode = #tpu.pipeline_mode<synchronous>, transform_indices = @transform_4, window_bounds = array<i64: 1, 128>}, {pipeline_mode = #tpu.pipeline_mode<synchronous>, transform_indices = @transform_5, window_bounds = array<i64: 128, 128>}, {pipeline_mode = #tpu.pipeline_mode<synchronous>, transform_indices = @transform_6, window_bounds = array<i64: 1, 128>}, {pipeline_mode = #tpu.pipeline_mode<synchronous>, transform_indices = @transform_7, window_bounds = array<i64: 128, 8>}, {pipeline_mode = #tpu.pipeline_mode<synchronous>, transform_indices = @transform_8, window_bounds = array<i64: 1, 8>}, {transform_indices = @transform_9, window_bounds = array<i64: 8, 8>}]} {
    %c0 = arith.constant 0 : index
    %c0_0 = arith.constant 0 : index
    %0 = vector.load %arg1[%c0, %c0_0] : memref<8x16xf32, #tpu.memory_space<vmem>>, vector<8x16xf32>
    %1 = arith.truncf %0 : vector<8x16xf32> to vector<8x16xbf16>
    %c0_1 = arith.constant 0 : index
    %c0_2 = arith.constant 0 : index
    %2 = vector.load %arg2[%c0_1, %c0_2] : memref<8x8xf32, #tpu.memory_space<vmem>>, vector<8x8xf32>
    %3 = arith.truncf %2 : vector<8x8xf32> to vector<8x8xbf16>
    %c0_3 = arith.constant 0 : index
    %c0_4 = arith.constant 0 : index
    %4 = vector.load %arg3[%c0_3, %c0_4] : memref<16x128xbf16, #tpu.memory_space<vmem>>, vector<16x128xbf16>
    %cst = arith.constant dense<0.000000e+00> : vector<8x128xf32>
    %5 = tpu.matmul %1, %4, %cst {dimension_numbers = #tpu.dot_dimension_numbers<[1], [0], [0], [1], [0, 0, 1, 1], [], []>} : vector<8x16xbf16>, vector<16x128xbf16>, vector<8x128xf32> -> vector<8x128xf32>
    %c0_5 = arith.constant 0 : index
    %c0_6 = arith.constant 0 : index
    %6 = vector.load %arg4[%c0_5, %c0_6] : memref<8x128xbf16, #tpu.memory_space<vmem>>, vector<8x128xbf16>
    %cst_7 = arith.constant dense<0.000000e+00> : vector<8x128xf32>
    %7 = tpu.matmul %3, %6, %cst_7 {dimension_numbers = #tpu.dot_dimension_numbers<[1], [0], [0], [1], [0, 0, 1, 1], [], []>} : vector<8x8xbf16>, vector<8x128xbf16>, vector<8x128xf32> -> vector<8x128xf32>
    %8 = arith.addf %5, %7 : vector<8x128xf32>
    %c0_8 = arith.constant 0 : index
    %c0_9 = arith.constant 0 : index
    %9 = vector.load %arg5[%c0_8, %c0_9] : memref<1x128xf32, #tpu.memory_space<vmem>>, vector<1x128xf32>
    %10 = vector.broadcast %9 : vector<1x128xf32> to vector<8x128xf32>
    %11 = arith.addf %8, %10 : vector<8x128xf32>
    %cst_10 = arith.constant 0.000000e+00 : f32
    %12 = vector.broadcast %cst_10 : f32 to vector<8x128xf32>
    %13 = arith.maximumf %11, %12 : vector<8x128xf32>
    %14 = arith.truncf %13 : vector<8x128xf32> to vector<8x128xbf16>
    %c0_11 = arith.constant 0 : index
    %c0_12 = arith.constant 0 : index
    %15 = vector.load %arg6[%c0_11, %c0_12] : memref<128x128xbf16, #tpu.memory_space<vmem>>, vector<128x128xbf16>
    %cst_13 = arith.constant dense<0.000000e+00> : vector<8x128xf32>
    %16 = tpu.matmul %14, %15, %cst_13 {dimension_numbers = #tpu.dot_dimension_numbers<[1], [0], [0], [1], [0, 0, 1, 1], [], []>} : vector<8x128xbf16>, vector<128x128xbf16>, vector<8x128xf32> -> vector<8x128xf32>
    %c0_14 = arith.constant 0 : index
    %c0_15 = arith.constant 0 : index
    %17 = vector.load %arg7[%c0_14, %c0_15] : memref<1x128xf32, #tpu.memory_space<vmem>>, vector<1x128xf32>
    %18 = vector.broadcast %17 : vector<1x128xf32> to vector<8x128xf32>
    %19 = arith.addf %16, %18 : vector<8x128xf32>
    %cst_16 = arith.constant 0.000000e+00 : f32
    %20 = vector.broadcast %cst_16 : f32 to vector<8x128xf32>
    %21 = arith.maximumf %19, %20 : vector<8x128xf32>
    %22 = arith.truncf %21 : vector<8x128xf32> to vector<8x128xbf16>
    %c0_17 = arith.constant 0 : index
    %c0_18 = arith.constant 0 : index
    %23 = vector.load %arg8[%c0_17, %c0_18] : memref<128x8xbf16, #tpu.memory_space<vmem>>, vector<128x8xbf16>
    %cst_19 = arith.constant dense<0.000000e+00> : vector<8x8xf32>
    %24 = tpu.matmul %22, %23, %cst_19 {dimension_numbers = #tpu.dot_dimension_numbers<[1], [0], [0], [1], [0, 0, 1, 1], [], []>} : vector<8x128xbf16>, vector<128x8xbf16>, vector<8x8xf32> -> vector<8x8xf32>
    %c0_20 = arith.constant 0 : index
    %c0_21 = arith.constant 0 : index
    %25 = vector.load %arg9[%c0_20, %c0_21] : memref<1x8xf32, #tpu.memory_space<vmem>>, vector<1x8xf32>
    %26 = vector.broadcast %25 : vector<1x8xf32> to vector<8x8xf32>
    %27 = arith.addf %24, %26 : vector<8x8xf32>
    %28 = math.tanh %27 : vector<8x8xf32>
    %cst_22 = arith.constant 5.000000e-02 : f32
    %29 = vector.broadcast %cst_22 : f32 to vector<8x8xf32>
    %30 = arith.mulf %28, %29 : vector<8x8xf32>
    %31 = arith.addf %2, %30 : vector<8x8xf32>
    %cst_23 = arith.constant -1.000000e+00 : f32
    %cst_24 = arith.constant 1.000000e+00 : f32
    %32 = vector.broadcast %cst_23 : f32 to vector<8x8xf32>
    %33 = arith.maximumf %32, %31 : vector<8x8xf32>
    %34 = vector.broadcast %cst_24 : f32 to vector<8x8xf32>
    %35 = arith.minimumf %34, %33 : vector<8x8xf32>
    %c0_25 = arith.constant 0 : index
    %c0_26 = arith.constant 0 : index
    %36 = vector.load %arg10[%c0_25, %c0_26] : memref<8x8xf32, #tpu.memory_space<vmem>>, vector<8x8xf32>
    tpu.vector_store %arg10[%c0_25, %c0_26], %35 {strides = array<i32>} : memref<8x8xf32, #tpu.memory_space<vmem>>, vector<8x8xf32>,
    return
  }
  func.func @transform_0(%arg0: i32) -> (i32, i32) {
    %c0_i32 = arith.constant 0 : i32
    %c0_i32_0 = arith.constant 0 : i32
    return %arg0, %c0_i32 : i32, i32
  }
  func.func @transform_1(%arg0: i32) -> (i32, i32) {
    %c0_i32 = arith.constant 0 : i32
    %c0_i32_0 = arith.constant 0 : i32
    return %arg0, %c0_i32 : i32, i32
  }
  func.func @transform_2(%arg0: i32) -> (i32, i32) {
    %c0_i32 = arith.constant 0 : i32
    %c0_i32_0 = arith.constant 0 : i32
    %c0_i32_1 = arith.constant 0 : i32
    return %c0_i32, %c0_i32_0 : i32, i32
  }
  func.func @transform_3(%arg0: i32) -> (i32, i32) {
    %c0_i32 = arith.constant 0 : i32
    %c0_i32_0 = arith.constant 0 : i32
    %c0_i32_1 = arith.constant 0 : i32
    return %c0_i32, %c0_i32_0 : i32, i32
  }
  func.func @transform_4(%arg0: i32) -> (i32, i32) {
    %c0_i32 = arith.constant 0 : i32
    %c0_i32_0 = arith.constant 0 : i32
    %c0_i32_1 = arith.constant 0 : i32
    return %c0_i32, %c0_i32_0 : i32, i32
  }
  func.func @transform_5(%arg0: i32) -> (i32, i32) {
    %c0_i32 = arith.constant 0 : i32
    %c0_i32_0 = arith.constant 0 : i32
    %c0_i32_1 = arith.constant 0 : i32
    return %c0_i32, %c0_i32_0 : i32, i32
  }
  func.func @transform_6(%arg0: i32) -> (i32, i32) {
    %c0_i32 = arith.constant 0 : i32
    %c0_i32_0 = arith.constant 0 : i32
    %c0_i32_1 = arith.constant 0 : i32
    return %c0_i32, %c0_i32_0 : i32, i32
  }
  func.func @transform_7(%arg0: i32) -> (i32, i32) {
    %c0_i32 = arith.constant 0 : i32
    %c0_i32_0 = arith.constant 0 : i32
    %c0_i32_1 = arith.constant 0 : i32
    return %c0_i32, %c0_i32_0 : i32, i32
  }
  func.func @transform_8(%arg0: i32) -> (i32, i32) {
    %c0_i32 = arith.constant 0 : i32
    %c0_i32_0 = arith.constant 0 : i32
    %c0_i32_1 = arith.constant 0 : i32
    return %c0_i32, %c0_i32_0 : i32, i32
  }
  func.func @transform_9(%arg0: i32) -> (i32, i32) {
    %c0_i32 = arith.constant 0 : i32
    %c0_i32_0 = arith.constant 0 : i32
    return %arg0, %c0_i32 : i32, i32
  }
}

</mosaic_0001>

<llo_original>
// kernel: tpu_custom_call.1
$region0: #{tpu_custom_call.1}
  #allocation0 [shape = 'u32[]', space=smem, size = 0x4, offset = 0x4, fixed_abs, tag = 'smem constant byte address 0x4 - core index']
  #allocation1 [shape = 'u32[144,128]{1,0:T(1,128)}', space=vmem, size = 0x12000, scoped, tag = 'internal scratch']
  %s0 = inlined_call_operand.vmem [shape: f32[8,16], index: 0, kind: input, shape index: {}]
  %s1 = inlined_call_operand.vmem [shape: f32[8,8], index: 1, kind: input, shape index: {}]
  %s2 = inlined_call_operand.hbm [shape: bf16[16,128], index: 2, kind: input, shape index: {}]
  %s3 = inlined_call_operand.vmem [shape: bf16[8,128], index: 3, kind: input, shape index: {}]
  %s4 = inlined_call_operand.vmem [shape: f32[1,128], index: 4, kind: input, shape index: {}]
  %s5 = inlined_call_operand.vmem [shape: bf16[128,128], index: 5, kind: input, shape index: {}]
  %s6 = inlined_call_operand.vmem [shape: f32[1,128], index: 6, kind: input, shape index: {}]
  %s7 = inlined_call_operand.vmem [shape: bf16[128,8], index: 7, kind: input, shape index: {}]
  %s8 = inlined_call_operand.vmem [shape: f32[1,8], index: 8, kind: input, shape index: {}]
  %s9 = inlined_call_operand.hbm [shape: f32[8,8], index: 9, kind: output, shape index: {}]
  %s10 = sld [smem:[#allocation0]]
  $region50: #{tpu_custom_call.1} parent=0
    _
  %s12 = ssub.s32 1, %s10
  %s13 = scalar_select 0, %s12, %s10
  $region1: #{tpu_custom_call.1} parent=0
    #allocation2 [shape = 'u8[4096]{0}', space=vmem, size = 0x1000, scoped, tag = 'input window, operand 2, single buffered']
    #allocation3 [shape = 's32[1]{0}', space=sflag, size = 0x4, scoped, tag = 'scoped memory for tpu_custom_call.1']
    #allocation4 [shape = 's32[1]{0}', space=sflag, size = 0x4, scoped, tag = 'scoped memory for tpu_custom_call.1']
    #allocation5 [shape = 'u8[4096]{0}', space=vmem, size = 0x1000, scoped, tag = 'output window, operand 0, single buffered']
    %14 = vsyncpa [#allocation3], 0
    %15 = vsyncpa [#allocation4], 0
    // Predicated region
    $region2: #{tpu_custom_call.1} parent=1 // pred_check
      _
    $region3: #{tpu_custom_call.1} parent=1 // pred_check_branch
      %17 = sbr.rel (0) target = $region5
    $region4: #{tpu_custom_call.1} parent=1 // pred_region
      _
    $region5: #{tpu_custom_call.1} parent=1 // pred_fallthru
      _
    // Predicated region
    $region6: #{tpu_custom_call.1} parent=1 // pred_check
      _
    $region7: #{tpu_custom_call.1} parent=1 // pred_check_branch
      %19 = sbr.rel (0) target = $region9
    $region8: #{tpu_custom_call.1} parent=1 // pred_region
      _
    $region9: #{tpu_custom_call.1} parent=1 // pred_fallthru
      _
    // Predicated region
    $region10: #{tpu_custom_call.1} parent=1 // pred_check
      _
    $region11: #{tpu_custom_call.1} parent=1 // pred_check_branch
      %21 = sbr.rel (0) target = $region13
    $region12: #{tpu_custom_call.1} parent=1 // pred_region
      %s23 = ssub.s32 128, 128
      %24 = vsyncadd [#allocation3], %s23
      %s25 = sshll.u32 [#allocation2], 4
      %s26 = int_to_ptr.vmem [resolvable:$true] %s25
      %31 = dma.hbm_to_vmem [thread:$0]  %s2, 128, %s26, [#allocation3], 64, 64, 4
    $region13: #{tpu_custom_call.1} parent=1 // pred_fallthru
      _
    // Predicated region
    $region14: #{tpu_custom_call.1} parent=1 // pred_check
      _
    $region15: #{tpu_custom_call.1} parent=1 // pred_check_branch
      %33 = sbr.rel (0) target = $region17
    $region16: #{tpu_custom_call.1} parent=1 // pred_region
      _
    $region17: #{tpu_custom_call.1} parent=1 // pred_fallthru
      _
    // Predicated region
    $region18: #{tpu_custom_call.1} parent=1 // pred_check
      _
    $region19: #{tpu_custom_call.1} parent=1 // pred_check_branch
      %35 = sbr.rel (0) target = $region21
    $region20: #{tpu_custom_call.1} parent=1 // pred_region
      _
    $region21: #{tpu_custom_call.1} parent=1 // pred_fallthru
      _
    // Predicated region
    $region22: #{tpu_custom_call.1} parent=1 // pred_check
      _
    $region23: #{tpu_custom_call.1} parent=1 // pred_check_branch
      %37 = sbr.rel (0) target = $region25
    $region24: #{tpu_custom_call.1} parent=1 // pred_region
      _
    $region25: #{tpu_custom_call.1} parent=1 // pred_fallthru
      _
    // Predicated region
    $region26: #{tpu_custom_call.1} parent=1 // pred_check
      _
    $region27: #{tpu_custom_call.1} parent=1 // pred_check_branch
      %39 = sbr.rel (0) target = $region29
    $region28: #{tpu_custom_call.1} parent=1 // pred_region
      _
    $region29: #{tpu_custom_call.1} parent=1 // pred_fallthru
      _
    // Predicated region
    $region30: #{tpu_custom_call.1} parent=1 // pred_check
      _
    $region31: #{tpu_custom_call.1} parent=1 // pred_check_branch
      %41 = sbr.rel (0) target = $region33
    $region32: #{tpu_custom_call.1} parent=1 // pred_region
      _
    $region33: #{tpu_custom_call.1} parent=1 // pred_fallthru
      _
    // Predicated region
    $region34: #{tpu_custom_call.1} parent=1 // pred_check
      _
    $region35: #{tpu_custom_call.1} parent=1 // pred_check_branch
      %43 = sbr.rel (0) target = $region37
    $region36: #{tpu_custom_call.1} parent=1 // pred_region
      _
    $region37: #{tpu_custom_call.1} parent=1 // pred_fallthru
      _
    // Predicated region
    $region38: #{tpu_custom_call.1} parent=1 // pred_check
      _
    $region39: #{tpu_custom_call.1} parent=1 // pred_check_branch
      %45 = sbr.rel (0) target = $region41
    $region40: #{tpu_custom_call.1} parent=1 // pred_region
      %46 = dma.done [#allocation3], 128
    $region41: #{tpu_custom_call.1} parent=1 // pred_fallthru
      _
    %v48 = vld [vmem:[%s0] sm:$0xff]
    %v49 = vpack.c.bf16 %v48, %v48
    %v50 = vld [vmem:[%s1] sm:$0xff]
    %v51 = vpack.c.bf16 %v50, %v50
    %v52 = vld [vmem:[#allocation2] sm:$0xf]
    %v53 = vld [vmem:[#allocation2 + $0x4] sm:$0xf]
    %v54 = vld [vmem:[%s3] sm:$0xf]
    %vm55 = vcmask 64512
    %v57 = vsel %vm55, %v51, 0
    %vm59 = vcmask 1043456
    %v61 = vsel %vm59, %v54, 0
    %63 = vmatprep.subr.bf16.mxu0 0
    %64 = vmatpush1.bf16.msra.mxu0 %v61
    %65 = vmatprep.subr.bf16.mxu0 0
    %66 = vmatpush1.bf16.msra.mxu0 0
    %67 = vmatprep.subr.bf16.mxu0 0
    %68 = vmatpush1.bf16.msra.mxu0 0
    %69 = vmatprep.subr.bf16.mxu0 0
    %70 = vmatpush1.bf16.msra.mxu0 0
    %71 = vmatprep.subr.bf16.mxu0 0
    %72 = vmatpush1.bf16.msra.mxu0 0
    %73 = vmatprep.subr.bf16.mxu0 0
    %74 = vmatpush1.bf16.msra.mxu0 0
    %75 = vmatprep.subr.bf16.mxu0 0
    %76 = vmatpush1.bf16.msra.mxu0 0
    %77 = vmatprep.subr.bf16.mxu0 0
    %78 = vmatpush1.bf16.msra.mxu0 0
    %79 = vmatprep.subr.bf16.mxu0 0
    %80 = vmatpush1.bf16.msra.mxu0 0
    %81 = vmatprep.subr.bf16.mxu0 0
    %82 = vmatpush1.bf16.msra.mxu0 0
    %83 = vmatprep.subr.bf16.mxu0 0
    %84 = vmatpush1.bf16.msra.mxu0 0
    %85 = vmatprep.subr.bf16.mxu0 0
    %86 = vmatpush1.bf16.msra.mxu0 0
    %87 = vmatprep.subr.bf16.mxu0 0
    %88 = vmatpush1.bf16.msra.mxu0 0
    %89 = vmatprep.subr.bf16.mxu0 0
    %90 = vmatpush1.bf16.msra.mxu0 0
    %91 = vmatprep.subr.bf16.mxu0 0
    %92 = vmatpush1.bf16.msra.mxu0 0
    %93 = vmatprep.subr.bf16.mxu0 0
    %94 = vmatpush1.bf16.msra.mxu0 0
    %95 = vmatprep.mubr.bf16.mxu0 0
    %96 = vmatmul.mubr.bf16.gmra.mrb[0].mxu0 %v57
    %v97 = vpop.f32.mrb[0].mxu0
    %v98 = vadd.f32 0.0, %v97
    %v99 = vpop.f32.mrb[0].mxu0
    %v100 = vpop.f32.mrb[0].mxu0
    %v101 = vpop.f32.mrb[0].mxu0
    %102 = vdwg.mxu0
    %v105 = vunpack.c.l.b16 %v52
    %v106 = vunpack.c.l.b16 %v53
    %v107 = vpack.c.b16 %v106, %v105
    %vm109 = vcmask 130048
    %v111 = vsel %vm109, %v49, 0
    %113 = vmatprep.subr.bf16.mxu0 0
    %114 = vmatpush1.bf16.msra.mxu0 %v107
    %115 = vmatprep.subr.bf16.mxu0 0
    %116 = vmatpush1.bf16.msra.mxu0 0
    %117 = vmatprep.subr.bf16.mxu0 0
    %118 = vmatpush1.bf16.msra.mxu0 0
    %119 = vmatprep.subr.bf16.mxu0 0
    %120 = vmatpush1.bf16.msra.mxu0 0
    %121 = vmatprep.subr.bf16.mxu0 0
    %122 = vmatpush1.bf16.msra.mxu0 0
    %123 = vmatprep.subr.bf16.mxu0 0
    %124 = vmatpush1.bf16.msra.mxu0 0
    %125 = vmatprep.subr.bf16.mxu0 0
    %126 = vmatpush1.bf16.msra.mxu0 0
    %127 = vmatprep.subr.bf16.mxu0 0
    %128 = vmatpush1.bf16.msra.mxu0 0
    %129 = vmatprep.subr.bf16.mxu0 0
    %130 = vmatpush1.bf16.msra.mxu0 0
    %131 = vmatprep.subr.bf16.mxu0 0
    %132 = vmatpush1.bf16.msra.mxu0 0
    %133 = vmatprep.subr.bf16.mxu0 0
    %134 = vmatpush1.bf16.msra.mxu0 0
    %135 = vmatprep.subr.bf16.mxu0 0
    %136 = vmatpush1.bf16.msra.mxu0 0
    %137 = vmatprep.subr.bf16.mxu0 0
    %138 = vmatpush1.bf16.msra.mxu0 0
    %139 = vmatprep.subr.bf16.mxu0 0
    %140 = vmatpush1.bf16.msra.mxu0 0
    %141 = vmatprep.subr.bf16.mxu0 0
    %142 = vmatpush1.bf16.msra.mxu0 0
    %143 = vmatprep.subr.bf16.mxu0 0
    %144 = vmatpush1.bf16.msra.mxu0 0
    %145 = vmatprep.mubr.bf16.mxu0 0
    %146 = vmatmul.mubr.bf16.gmra.mrb[0].mxu0 %v111
    %v147 = vpop.f32.mrb[0].mxu0
    %v148 = vadd.f32 %v98, %v147
    %v149 = vpop.f32.mrb[0].mxu0
    %v150 = vpop.f32.mrb[0].mxu0
    %v151 = vpop.f32.mrb[0].mxu0
    %152 = vdwg.mxu0
    %v153 = vld [vmem:[%s4] sm:$0x1]
    %v155 = vlaneseq
    %v156 = vshrl.u32 %v155, 7
    %v157 = vsub.s32 0, %v156
    %v158 = vrot.slane %v153, %v157
    %v160 = vadd.f32 %v148, %v158
    %v161 = vmax.f32 %v160, 0.0
    %v162 = vpack.c.bf16 %v161, %v161
    %v163 = vld [vmem:[%s5] sm:$0xf]
    %v164 = vld [vmem:[%s5 + $0x4] sm:$0xf]
    %v165 = vld [vmem:[%s5 + $0x8] sm:$0xf]
    %v166 = vld [vmem:[%s5 + $0xc] sm:$0xf]
    %v167 = vld [vmem:[%s5 + $0x10] sm:$0xf]
    %v168 = vld [vmem:[%s5 + $0x14] sm:$0xf]
    %v169 = vld [vmem:[%s5 + $0x18] sm:$0xf]
    %v170 = vld [vmem:[%s5 + $0x1c] sm:$0xf]
    %v171 = vld [vmem:[%s5 + $0x20] sm:$0xf]
    %v172 = vld [vmem:[%s5 + $0x24] sm:$0xf]
    %v173 = vld [vmem:[%s5 + $0x28] sm:$0xf]
    %v174 = vld [vmem:[%s5 + $0x2c] sm:$0xf]
    %v175 = vld [vmem:[%s5 + $0x30] sm:$0xf]
    %v176 = vld [vmem:[%s5 + $0x34] sm:$0xf]
    %v177 = vld [vmem:[%s5 + $0x38] sm:$0xf]
    %v178 = vld [vmem:[%s5 + $0x3c] sm:$0xf]
    %v179 = vld [vmem:[%s6] sm:$0x1]
    %v181 = vlaneseq
    %v182 = vshrl.u32 %v181, 7
    %v183 = vsub.s32 0, %v182
    %v184 = vrot.slane %v179, %v183
    %v202 = vunpack.c.l.b16 %v163
    %v203 = vunpack.c.l.b16 %v164
    %v204 = vunpack.c.l.b16 %v165
    %v205 = vunpack.c.l.b16 %v166
    %v206 = vunpack.c.l.b16 %v167
    %v207 = vunpack.c.l.b16 %v168
    %v208 = vunpack.c.l.b16 %v169
    %v209 = vunpack.c.l.b16 %v170
    %v210 = vunpack.c.l.b16 %v171
    %v211 = vunpack.c.l.b16 %v172
    %v212 = vunpack.c.l.b16 %v173
    %v213 = vunpack.c.l.b16 %v174
    %v214 = vunpack.c.l.b16 %v175
    %v215 = vunpack.c.l.b16 %v176
    %v216 = vunpack.c.l.b16 %v177
    %v217 = vunpack.c.l.b16 %v178
    %v218 = vpack.c.b16 %v203, %v202
    %v219 = vpack.c.b16 %v205, %v204
    %v220 = vpack.c.b16 %v207, %v206
    %v221 = vpack.c.b16 %v209, %v208
    %v222 = vpack.c.b16 %v211, %v210
    %v223 = vpack.c.b16 %v213, %v212
    %v224 = vpack.c.b16 %v215, %v214
    %v225 = vpack.c.b16 %v217, %v216
    %234 = vmatprep.subr.bf16.mxu0 0
    %235 = vmatpush1.bf16.msra.mxu0 %v218
    %236 = vmatprep.subr.bf16.mxu0 0
    %237 = vmatpush1.bf16.msra.mxu0 %v219
    %238 = vmatprep.subr.bf16.mxu0 0
    %239 = vmatpush1.bf16.msra.mxu0 %v220
    %240 = vmatprep.subr.bf16.mxu0 0
    %241 = vmatpush1.bf16.msra.mxu0 %v221
    %242 = vmatprep.subr.bf16.mxu0 0
    %243 = vmatpush1.bf16.msra.mxu0 %v222
    %244 = vmatprep.subr.bf16.mxu0 0
    %245 = vmatpush1.bf16.msra.mxu0 %v223
    %246 = vmatprep.subr.bf16.mxu0 0
    %247 = vmatpush1.bf16.msra.mxu0 %v224
    %248 = vmatprep.subr.bf16.mxu0 0
    %249 = vmatpush1.bf16.msra.mxu0 %v225
    %250 = vmatprep.subr.bf16.mxu0 0
    %251 = vmatpush1.bf16.msra.mxu0 0
    %252 = vmatprep.subr.bf16.mxu0 0
    %253 = vmatpush1.bf16.msra.mxu0 0
    %254 = vmatprep.subr.bf16.mxu0 0
    %255 = vmatpush1.bf16.msra.mxu0 0
    %256 = vmatprep.subr.bf16.mxu0 0
    %257 = vmatpush1.bf16.msra.mxu0 0
    %258 = vmatprep.subr.bf16.mxu0 0
    %259 = vmatpush1.bf16.msra.mxu0 0
    %260 = vmatprep.subr.bf16.mxu0 0
    %261 = vmatpush1.bf16.msra.mxu0 0
    %262 = vmatprep.subr.bf16.mxu0 0
    %263 = vmatpush1.bf16.msra.mxu0 0
    %264 = vmatprep.subr.bf16.mxu0 0
    %265 = vmatpush1.bf16.msra.mxu0 0
    %266 = vmatprep.mubr.bf16.mxu0 0
    %267 = vmatmul.mubr.bf16.gmra.mrb[0].mxu0 %v162
    %v268 = vpop.f32.mrb[0].mxu0
    %v269 = vadd.f32 %v184, %v268
    %v270 = vpop.f32.mrb[0].mxu0
    %v271 = vpop.f32.mrb[0].mxu0
    %v272 = vpop.f32.mrb[0].mxu0
    %273 = vdwg.mxu0
    %v274 = vmax.f32 %v269, 0.0
    %v275 = vpack.c.bf16 %v274, %v274
    %v276 = vld [vmem:[%s7] sm:$0xf]
    %v277 = vld [vmem:[%s7 + $0x4] sm:$0xf]
    %v278 = vld [vmem:[%s7 + $0x8] sm:$0xf]
    %v279 = vld [vmem:[%s7 + $0xc] sm:$0xf]
    %v280 = vld [vmem:[%s7 + $0x10] sm:$0xf]
    %v281 = vld [vmem:[%s7 + $0x14] sm:$0xf]
    %v282 = vld [vmem:[%s7 + $0x18] sm:$0xf]
    %v283 = vld [vmem:[%s7 + $0x1c] sm:$0xf]
    %v284 = vld [vmem:[%s7 + $0x20] sm:$0xf]
    %v285 = vld [vmem:[%s7 + $0x24] sm:$0xf]
    %v286 = vld [vmem:[%s7 + $0x28] sm:$0xf]
    %v287 = vld [vmem:[%s7 + $0x2c] sm:$0xf]
    %v288 = vld [vmem:[%s7 + $0x30] sm:$0xf]
    %v289 = vld [vmem:[%s7 + $0x34] sm:$0xf]
    %v290 = vld [vmem:[%s7 + $0x38] sm:$0xf]
    %v291 = vld [vmem:[%s7 + $0x3c] sm:$0xf]
    %v292 = vld [vmem:[%s8] sm:$0x1]
    %v294 = vlaneseq
    %v295 = vshrl.u32 %v294, 7
    %v296 = vsub.s32 0, %v295
    %v297 = vrot.slane %v292, %v296
    %v315 = vunpack.c.l.b16 %v276
    %v316 = vunpack.c.l.b16 %v277
    %v317 = vunpack.c.l.b16 %v278
    %v318 = vunpack.c.l.b16 %v279
    %v319 = vunpack.c.l.b16 %v280
    %v320 = vunpack.c.l.b16 %v281
    %v321 = vunpack.c.l.b16 %v282
    %v322 = vunpack.c.l.b16 %v283
    %v323 = vunpack.c.l.b16 %v284
    %v324 = vunpack.c.l.b16 %v285
    %v325 = vunpack.c.l.b16 %v286
    %v326 = vunpack.c.l.b16 %v287
    %v327 = vunpack.c.l.b16 %v288
    %v328 = vunpack.c.l.b16 %v289
    %v329 = vunpack.c.l.b16 %v290
    %v330 = vunpack.c.l.b16 %v291
    %v331 = vpack.c.b16 %v316, %v315
    %v332 = vpack.c.b16 %v318, %v317
    %v333 = vpack.c.b16 %v320, %v319
    %v334 = vpack.c.b16 %v322, %v321
    %v335 = vpack.c.b16 %v324, %v323
    %v336 = vpack.c.b16 %v326, %v325
    %v337 = vpack.c.b16 %v328, %v327
    %v338 = vpack.c.b16 %v330, %v329
    %347 = vmatprep.subr.bf16.mxu0 0
    %348 = vmatpush1.bf16.msra.mxu0 %v331
    %349 = vmatprep.subr.bf16.mxu0 0
    %350 = vmatpush1.bf16.msra.mxu0 %v332
    %351 = vmatprep.subr.bf16.mxu0 0
    %352 = vmatpush1.bf16.msra.mxu0 %v333
    %353 = vmatprep.subr.bf16.mxu0 0
    %354 = vmatpush1.bf16.msra.mxu0 %v334
    %355 = vmatprep.subr.bf16.mxu0 0
    %356 = vmatpush1.bf16.msra.mxu0 %v335
    %357 = vmatprep.subr.bf16.mxu0 0
    %358 = vmatpush1.bf16.msra.mxu0 %v336
    %359 = vmatprep.subr.bf16.mxu0 0
    %360 = vmatpush1.bf16.msra.mxu0 %v337
    %361 = vmatprep.subr.bf16.mxu0 0
    %362 = vmatpush1.bf16.msra.mxu0 %v338
    %363 = vmatprep.subr.bf16.mxu0 0
    %364 = vmatpush1.bf16.msra.mxu0 0
    %365 = vmatprep.subr.bf16.mxu0 0
    %366 = vmatpush1.bf16.msra.mxu0 0
    %367 = vmatprep.subr.bf16.mxu0 0
    %368 = vmatpush1.bf16.msra.mxu0 0
    %369 = vmatprep.subr.bf16.mxu0 0
    %370 = vmatpush1.bf16.msra.mxu0 0
    %371 = vmatprep.subr.bf16.mxu0 0
    %372 = vmatpush1.bf16.msra.mxu0 0
    %373 = vmatprep.subr.bf16.mxu0 0
    %374 = vmatpush1.bf16.msra.mxu0 0
    %375 = vmatprep.subr.bf16.mxu0 0
    %376 = vmatpush1.bf16.msra.mxu0 0
    %377 = vmatprep.subr.bf16.mxu0 0
    %378 = vmatpush1.bf16.msra.mxu0 0
    %379 = vmatprep.mubr.bf16.mxu0 0
    %380 = vmatmul.mubr.bf16.gmra.mrb[0].mxu0 %v275
    %v381 = vpop.f32.mrb[0].mxu0
    %v382 = vadd.f32 %v297, %v381
    %v383 = vpop.f32.mrb[0].mxu0
    %v384 = vpop.f32.mrb[0].mxu0
    %v385 = vpop.f32.mrb[0].mxu0
    %386 = vdwg.mxu0
    %v387 = vtanh.pop %v382
    %v388 = vmul.f32 %v387, 0.05
    %v389 = vadd.f32 %v50, %v388
    %v390 = vmax.f32 %v389, -1.0
    %v391 = vmin.f32 %v390, 1.0
    %392 = vst.msk [vmem:[#allocation5] sm:$0xff] %vm55, %v391
    // Predicated region
    $region42: #{tpu_custom_call.1} parent=1 // pred_check
      _
    $region43: #{tpu_custom_call.1} parent=1 // pred_check_branch
      %394 = sbr.rel (0) target = $region45
    $region44: #{tpu_custom_call.1} parent=1 // pred_region
      %s396 = ssub.s32 128, 128
      %397 = vsyncadd [#allocation4], %s396
      %s399 = sshll.u32 [#allocation5], 4
      %s400 = int_to_ptr.vmem [resolvable:$true] %s399
      %402 = dma.vmem_to_hbm [thread:$0]  %s400, 128, %s9, [#allocation4]
    $region45: #{tpu_custom_call.1} parent=1 // pred_fallthru
      _
    // Predicated region
    $region46: #{tpu_custom_call.1} parent=1 // pred_check
      _
    $region47: #{tpu_custom_call.1} parent=1 // pred_check_branch
      %404 = sbr.rel (0) target = $region49
    $region48: #{tpu_custom_call.1} parent=1 // pred_region
      %405 = dma.done [#allocation4], 128
    $region49: #{tpu_custom_call.1} parent=1 // pred_fallthru
      _
    %406 = vsyncpa [#allocation3], 1
    %407 = vsyncpa [#allocation4], 1

// kernel: tpu_custom_call.1
$region0: #{tpu_custom_call.1}
  #allocation0 [shape = 'u32[]', space=smem, size = 0x4, offset = 0x4, fixed_abs, tag = 'smem constant byte address 0x4 - core index']
  #allocation1 [shape = 'u32[144,128]{1,0:T(1,128)}', space=vmem, size = 0x12000, scoped, tag = 'internal scratch']
  %s0 = inlined_call_operand.vmem [shape: f32[8,16], index: 0, kind: input, shape index: {}]
  %s1 = inlined_call_operand.vmem [shape: f32[8,8], index: 1, kind: input, shape index: {}]
  %s2 = inlined_call_operand.hbm [shape: bf16[16,128], index: 2, kind: input, shape index: {}]
  %s3 = inlined_call_operand.vmem [shape: bf16[8,128], index: 3, kind: input, shape index: {}]
  %s4 = inlined_call_operand.vmem [shape: f32[1,128], index: 4, kind: input, shape index: {}]
  %s5 = inlined_call_operand.vmem [shape: bf16[128,128], index: 5, kind: input, shape index: {}]
  %s6 = inlined_call_operand.vmem [shape: f32[1,128], index: 6, kind: input, shape index: {}]
  %s7 = inlined_call_operand.vmem [shape: bf16[128,8], index: 7, kind: input, shape index: {}]
  %s8 = inlined_call_operand.vmem [shape: f32[1,8], index: 8, kind: input, shape index: {}]
  %s9 = inlined_call_operand.hbm [shape: f32[8,8], index: 9, kind: output, shape index: {}]
  %s10 = sld [smem:[#allocation0]]
  $region50: #{tpu_custom_call.1} parent=0
    _
  %s12 = ssub.s32 1, %s10
  %s13 = scalar_select 0, %s12, %s10
  $region1: #{tpu_custom_call.1} parent=0
    #allocation2 [shape = 'u8[4096]{0}', space=vmem, size = 0x1000, scoped, tag = 'input window, operand 2, single buffered']
    #allocation3 [shape = 's32[1]{0}', space=sflag, size = 0x4, scoped, tag = 'scoped memory for tpu_custom_call.1']
    #allocation4 [shape = 's32[1]{0}', space=sflag, size = 0x4, scoped, tag = 'scoped memory for tpu_custom_call.1']
    #allocation5 [shape = 'u8[4096]{0}', space=vmem, size = 0x1000, scoped, tag = 'output window, operand 0, single buffered']
    %14 = vsyncpa [#allocation3], 0
    %15 = vsyncpa [#allocation4], 0
    // Predicated region
    $region2: #{tpu_custom_call.1} parent=1 // pred_check
      _
    $region3: #{tpu_custom_call.1} parent=1 // pred_check_branch
      %17 = sbr.rel (0) target = $region5
    $region4: #{tpu_custom_call.1} parent=1 // pred_region
      _
    $region5: #{tpu_custom_call.1} parent=1 // pred_fallthru
      _
    // Predicated region
    $region6: #{tpu_custom_call.1} parent=1 // pred_check
      _
    $region7: #{tpu_custom_call.1} parent=1 // pred_check_branch
      %19 = sbr.rel (0) target = $region9
    $region8: #{tpu_custom_call.1} parent=1 // pred_region
      _
    $region9: #{tpu_custom_call.1} parent=1 // pred_fallthru
      _
    // Predicated region
    $region10: #{tpu_custom_call.1} parent=1 // pred_check
      _
    $region11: #{tpu_custom_call.1} parent=1 // pred_check_branch
      %21 = sbr.rel (0) target = $region13
    $region12: #{tpu_custom_call.1} parent=1 // pred_region
      %s23 = ssub.s32 128, 128
      %24 = vsyncadd [#allocation3], %s23
      %s25 = sshll.u32 [#allocation2], 4
      %s26 = int_to_ptr.vmem [resolvable:$true] %s25
      %31 = dma.hbm_to_vmem [thread:$0]  %s2, 128, %s26, [#allocation3], 64, 64, 4
    $region13: #{tpu_custom_call.1} parent=1 // pred_fallthru
      _
    // Predicated region
    $region14: #{tpu_custom_call.1} parent=1 // pred_check
      _
    $region15: #{tpu_custom_call.1} parent=1 // pred_check_branch
      %33 = sbr.rel (0) target = $region17
    $region16: #{tpu_custom_call.1} parent=1 // pred_region
      _
    $region17: #{tpu_custom_call.1} parent=1 // pred_fallthru
      _
    // Predicated region
    $region18: #{tpu_custom_call.1} parent=1 // pred_check
      _
    $region19: #{tpu_custom_call.1} parent=1 // pred_check_branch
      %35 = sbr.rel (0) target = $region21
    $region20: #{tpu_custom_call.1} parent=1 // pred_region
      _
    $region21: #{tpu_custom_call.1} parent=1 // pred_fallthru
      _
    // Predicated region
    $region22: #{tpu_custom_call.1} parent=1 // pred_check
      _
    $region23: #{tpu_custom_call.1} parent=1 // pred_check_branch
      %37 = sbr.rel (0) target = $region25
    $region24: #{tpu_custom_call.1} parent=1 // pred_region
      _
    $region25: #{tpu_custom_call.1} parent=1 // pred_fallthru
      _
    // Predicated region
    $region26: #{tpu_custom_call.1} parent=1 // pred_check
      _
    $region27: #{tpu_custom_call.1} parent=1 // pred_check_branch
      %39 = sbr.rel (0) target = $region29
    $region28: #{tpu_custom_call.1} parent=1 // pred_region
      _
    $region29: #{tpu_custom_call.1} parent=1 // pred_fallthru
      _
    // Predicated region
    $region30: #{tpu_custom_call.1} parent=1 // pred_check
      _
    $region31: #{tpu_custom_call.1} parent=1 // pred_check_branch
      %41 = sbr.rel (0) target = $region33
    $region32: #{tpu_custom_call.1} parent=1 // pred_region
      _
    $region33: #{tpu_custom_call.1} parent=1 // pred_fallthru
      _
    // Predicated region
    $region34: #{tpu_custom_call.1} parent=1 // pred_check
      _
    $region35: #{tpu_custom_call.1} parent=1 // pred_check_branch
      %43 = sbr.rel (0) target = $region37
    $region36: #{tpu_custom_call.1} parent=1 // pred_region
      _
    $region37: #{tpu_custom_call.1} parent=1 // pred_fallthru
      _
    // Predicated region
    $region38: #{tpu_custom_call.1} parent=1 // pred_check
      _
    $region39: #{tpu_custom_call.1} parent=1 // pred_check_branch
      %45 = sbr.rel (0) target = $region41
    $region40: #{tpu_custom_call.1} parent=1 // pred_region
      %46 = dma.done [#allocation3], 128
    $region41: #{tpu_custom_call.1} parent=1 // pred_fallthru
      _
    %v48 = vld [vmem:[%s0] sm:$0xff]
    %v49 = vpack.c.bf16 %v48, %v48
    %v50 = vld [vmem:[%s1] sm:$0xff]
    %v51 = vpack.c.bf16 %v50, %v50
    %v52 = vld [vmem:[#allocation2] sm:$0xf]
    %v53 = vld [vmem:[#allocation2 + $0x4] sm:$0xf]
    %v54 = vld [vmem:[%s3] sm:$0xf]
    %vm55 = vcmask 64512
    %v57 = vsel %vm55, %v51, 0
    %vm59 = vcmask 1043456
    %v61 = vsel %vm59, %v54, 0
    %63 = vmatprep.subr.bf16.mxu0 0
    %64 = vmatpush1.bf16.msra.mxu0 %v61
    %65 = vmatprep.subr.bf16.mxu0 0
    %66 = vmatpush1.bf16.msra.mxu0 0
    %67 = vmatprep.subr.bf16.mxu0 0
    %68 = vmatpush1.bf16.msra.mxu0 0
    %69 = vmatprep.subr.bf16.mxu0 0
    %70 = vmatpush1.bf16.msra.mxu0 0
    %71 = vmatprep.subr.bf16.mxu0 0
    %72 = vmatpush1.bf16.msra.mxu0 0
    %73 = vmatprep.subr.bf16.mxu0 0
    %74 = vmatpush1.bf16.msra.mxu0 0
    %75 = vmatprep.subr.bf16.mxu0 0
    %76 = vmatpush1.bf16.msra.mxu0 0
    %77 = vmatprep.subr.bf16.mxu0 0
    %78 = vmatpush1.bf16.msra.mxu0 0
    %79 = vmatprep.subr.bf16.mxu0 0
    %80 = vmatpush1.bf16.msra.mxu0 0
    %81 = vmatprep.subr.bf16.mxu0 0
    %82 = vmatpush1.bf16.msra.mxu0 0
    %83 = vmatprep.subr.bf16.mxu0 0
    %84 = vmatpush1.bf16.msra.mxu0 0
    %85 = vmatprep.subr.bf16.mxu0 0
    %86 = vmatpush1.bf16.msra.mxu0 0
    %87 = vmatprep.subr.bf16.mxu0 0
    %88 = vmatpush1.bf16.msra.mxu0 0
    %89 = vmatprep.subr.bf16.mxu0 0
    %90 = vmatpush1.bf16.msra.mxu0 0
    %91 = vmatprep.subr.bf16.mxu0 0
    %92 = vmatpush1.bf16.msra.mxu0 0
    %93 = vmatprep.subr.bf16.mxu0 0
    %94 = vmatpush1.bf16.msra.mxu0 0
    %95 = vmatprep.mubr.bf16.mxu0 0
    %96 = vmatmul.mubr.bf16.gmra.mrb[0].mxu0 %v57
    %v97 = vpop.f32.mrb[0].mxu0
    %v98 = vadd.f32 0.0, %v97
    %v99 = vpop.f32.mrb[0].mxu0
    %v100 = vpop.f32.mrb[0].mxu0
    %v101 = vpop.f32.mrb[0].mxu0
    %102 = vdwg.mxu0
    %v105 = vunpack.c.l.b16 %v52
    %v106 = vunpack.c.l.b16 %v53
    %v107 = vpack.c.b16 %v106, %v105
    %vm109 = vcmask 130048
    %v111 = vsel %vm109, %v49, 0
    %113 = vmatprep.subr.bf16.mxu0 0
    %114 = vmatpush1.bf16.msra.mxu0 %v107
    %115 = vmatprep.subr.bf16.mxu0 0
    %116 = vmatpush1.bf16.msra.mxu0 0
    %117 = vmatprep.subr.bf16.mxu0 0
    %118 = vmatpush1.bf16.msra.mxu0 0
    %119 = vmatprep.subr.bf16.mxu0 0
    %120 = vmatpush1.bf16.msra.mxu0 0
    %121 = vmatprep.subr.bf16.mxu0 0
    %122 = vmatpush1.bf16.msra.mxu0 0
    %123 = vmatprep.subr.bf16.mxu0 0
    %124 = vmatpush1.bf16.msra.mxu0 0
    %125 = vmatprep.subr.bf16.mxu0 0
    %126 = vmatpush1.bf16.msra.mxu0 0
    %127 = vmatprep.subr.bf16.mxu0 0
    %128 = vmatpush1.bf16.msra.mxu0 0
    %129 = vmatprep.subr.bf16.mxu0 0
    %130 = vmatpush1.bf16.msra.mxu0 0
    %131 = vmatprep.subr.bf16.mxu0 0
    %132 = vmatpush1.bf16.msra.mxu0 0
    %133 = vmatprep.subr.bf16.mxu0 0
    %134 = vmatpush1.bf16.msra.mxu0 0
    %135 = vmatprep.subr.bf16.mxu0 0
    %136 = vmatpush1.bf16.msra.mxu0 0
    %137 = vmatprep.subr.bf16.mxu0 0
    %138 = vmatpush1.bf16.msra.mxu0 0
    %139 = vmatprep.subr.bf16.mxu0 0
    %140 = vmatpush1.bf16.msra.mxu0 0
    %141 = vmatprep.subr.bf16.mxu0 0
    %142 = vmatpush1.bf16.msra.mxu0 0
    %143 = vmatprep.subr.bf16.mxu0 0
    %144 = vmatpush1.bf16.msra.mxu0 0
    %145 = vmatprep.mubr.bf16.mxu0 0
    %146 = vmatmul.mubr.bf16.gmra.mrb[0].mxu0 %v111
    %v147 = vpop.f32.mrb[0].mxu0
    %v148 = vadd.f32 %v98, %v147
    %v149 = vpop.f32.mrb[0].mxu0
    %v150 = vpop.f32.mrb[0].mxu0
    %v151 = vpop.f32.mrb[0].mxu0
    %152 = vdwg.mxu0
    %v153 = vld [vmem:[%s4] sm:$0x1]
    %v155 = vlaneseq
    %v156 = vshrl.u32 %v155, 7
    %v157 = vsub.s32 0, %v156
    %v158 = vrot.slane %v153, %v157
    %v160 = vadd.f32 %v148, %v158
    %v161 = vmax.f32 %v160, 0.0
    %v162 = vpack.c.bf16 %v161, %v161
    %v163 = vld [vmem:[%s5] sm:$0xf]
    %v164 = vld [vmem:[%s5 + $0x4] sm:$0xf]
    %v165 = vld [vmem:[%s5 + $0x8] sm:$0xf]
    %v166 = vld [vmem:[%s5 + $0xc] sm:$0xf]
    %v167 = vld [vmem:[%s5 + $0x10] sm:$0xf]
    %v168 = vld [vmem:[%s5 + $0x14] sm:$0xf]
    %v169 = vld [vmem:[%s5 + $0x18] sm:$0xf]
    %v170 = vld [vmem:[%s5 + $0x1c] sm:$0xf]
    %v171 = vld [vmem:[%s5 + $0x20] sm:$0xf]
    %v172 = vld [vmem:[%s5 + $0x24] sm:$0xf]
    %v173 = vld [vmem:[%s5 + $0x28] sm:$0xf]
    %v174 = vld [vmem:[%s5 + $0x2c] sm:$0xf]
    %v175 = vld [vmem:[%s5 + $0x30] sm:$0xf]
    %v176 = vld [vmem:[%s5 + $0x34] sm:$0xf]
    %v177 = vld [vmem:[%s5 + $0x38] sm:$0xf]
    %v178 = vld [vmem:[%s5 + $0x3c] sm:$0xf]
    %v179 = vld [vmem:[%s6] sm:$0x1]
    %v181 = vlaneseq
    %v182 = vshrl.u32 %v181, 7
    %v183 = vsub.s32 0, %v182
    %v184 = vrot.slane %v179, %v183
    %v202 = vunpack.c.l.b16 %v163
    %v203 = vunpack.c.l.b16 %v164
    %v204 = vunpack.c.l.b16 %v165
    %v205 = vunpack.c.l.b16 %v166
    %v206 = vunpack.c.l.b16 %v167
    %v207 = vunpack.c.l.b16 %v168
    %v208 = vunpack.c.l.b16 %v169
    %v209 = vunpack.c.l.b16 %v170
    %v210 = vunpack.c.l.b16 %v171
    %v211 = vunpack.c.l.b16 %v172
    %v212 = vunpack.c.l.b16 %v173
    %v213 = vunpack.c.l.b16 %v174
    %v214 = vunpack.c.l.b16 %v175
    %v215 = vunpack.c.l.b16 %v176
    %v216 = vunpack.c.l.b16 %v177
    %v217 = vunpack.c.l.b16 %v178
    %v218 = vpack.c.b16 %v203, %v202
    %v219 = vpack.c.b16 %v205, %v204
    %v220 = vpack.c.b16 %v207, %v206
    %v221 = vpack.c.b16 %v209, %v208
    %v222 = vpack.c.b16 %v211, %v210
    %v223 = vpack.c.b16 %v213, %v212
    %v224 = vpack.c.b16 %v215, %v214
    %v225 = vpack.c.b16 %v217, %v216
    %234 = vmatprep.subr.bf16.mxu0 0
    %235 = vmatpush1.bf16.msra.mxu0 %v218
    %236 = vmatprep.subr.bf16.mxu0 0
    %237 = vmatpush1.bf16.msra.mxu0 %v219
    %238 = vmatprep.subr.bf16.mxu0 0
    %239 = vmatpush1.bf16.msra.mxu0 %v220
    %240 = vmatprep.subr.bf16.mxu0 0
    %241 = vmatpush1.bf16.msra.mxu0 %v221
    %242 = vmatprep.subr.bf16.mxu0 0
    %243 = vmatpush1.bf16.msra.mxu0 %v222
    %244 = vmatprep.subr.bf16.mxu0 0
    %245 = vmatpush1.bf16.msra.mxu0 %v223
    %246 = vmatprep.subr.bf16.mxu0 0
    %247 = vmatpush1.bf16.msra.mxu0 %v224
    %248 = vmatprep.subr.bf16.mxu0 0
    %249 = vmatpush1.bf16.msra.mxu0 %v225
    %250 = vmatprep.subr.bf16.mxu0 0
    %251 = vmatpush1.bf16.msra.mxu0 0
    %252 = vmatprep.subr.bf16.mxu0 0
    %253 = vmatpush1.bf16.msra.mxu0 0
    %254 = vmatprep.subr.bf16.mxu0 0
    %255 = vmatpush1.bf16.msra.mxu0 0
    %256 = vmatprep.subr.bf16.mxu0 0
    %257 = vmatpush1.bf16.msra.mxu0 0
    %258 = vmatprep.subr.bf16.mxu0 0
    %259 = vmatpush1.bf16.msra.mxu0 0
    %260 = vmatprep.subr.bf16.mxu0 0
    %261 = vmatpush1.bf16.msra.mxu0 0
    %262 = vmatprep.subr.bf16.mxu0 0
    %263 = vmatpush1.bf16.msra.mxu0 0
    %264 = vmatprep.subr.bf16.mxu0 0
    %265 = vmatpush1.bf16.msra.mxu0 0
    %266 = vmatprep.mubr.bf16.mxu0 0
    %267 = vmatmul.mubr.bf16.gmra.mrb[0].mxu0 %v162
    %v268 = vpop.f32.mrb[0].mxu0
    %v269 = vadd.f32 %v184, %v268
    %v270 = vpop.f32.mrb[0].mxu0
    %v271 = vpop.f32.mrb[0].mxu0
    %v272 = vpop.f32.mrb[0].mxu0
    %273 = vdwg.mxu0
    %v274 = vmax.f32 %v269, 0.0
    %v275 = vpack.c.bf16 %v274, %v274
    %v276 = vld [vmem:[%s7] sm:$0xf]
    %v277 = vld [vmem:[%s7 + $0x4] sm:$0xf]
    %v278 = vld [vmem:[%s7 + $0x8] sm:$0xf]
    %v279 = vld [vmem:[%s7 + $0xc] sm:$0xf]
    %v280 = vld [vmem:[%s7 + $0x10] sm:$0xf]
    %v281 = vld [vmem:[%s7 + $0x14] sm:$0xf]
    %v282 = vld [vmem:[%s7 + $0x18] sm:$0xf]
    %v283 = vld [vmem:[%s7 + $0x1c] sm:$0xf]
    %v284 = vld [vmem:[%s7 + $0x20] sm:$0xf]
    %v285 = vld [vmem:[%s7 + $0x24] sm:$0xf]
    %v286 = vld [vmem:[%s7 + $0x28] sm:$0xf]
    %v287 = vld [vmem:[%s7 + $0x2c] sm:$0xf]
    %v288 = vld [vmem:[%s7 + $0x30] sm:$0xf]
    %v289 = vld [vmem:[%s7 + $0x34] sm:$0xf]
    %v290 = vld [vmem:[%s7 + $0x38] sm:$0xf]
    %v291 = vld [vmem:[%s7 + $0x3c] sm:$0xf]
    %v292 = vld [vmem:[%s8] sm:$0x1]
    %v294 = vlaneseq
    %v295 = vshrl.u32 %v294, 7
    %v296 = vsub.s32 0, %v295
    %v297 = vrot.slane %v292, %v296
    %v315 = vunpack.c.l.b16 %v276
    %v316 = vunpack.c.l.b16 %v277
    %v317 = vunpack.c.l.b16 %v278
    %v318 = vunpack.c.l.b16 %v279
    %v319 = vunpack.c.l.b16 %v280
    %v320 = vunpack.c.l.b16 %v281
    %v321 = vunpack.c.l.b16 %v282
    %v322 = vunpack.c.l.b16 %v283
    %v323 = vunpack.c.l.b16 %v284
    %v324 = vunpack.c.l.b16 %v285
    %v325 = vunpack.c.l.b16 %v286
    %v326 = vunpack.c.l.b16 %v287
    %v327 = vunpack.c.l.b16 %v288
    %v328 = vunpack.c.l.b16 %v289
    %v329 = vunpack.c.l.b16 %v290
    %v330 = vunpack.c.l.b16 %v291
    %v331 = vpack.c.b16 %v316, %v315
    %v332 = vpack.c.b16 %v318, %v317
    %v333 = vpack.c.b16 %v320, %v319
    %v334 = vpack.c.b16 %v322, %v321
    %v335 = vpack.c.b16 %v324, %v323
    %v336 = vpack.c.b16 %v326, %v325
    %v337 = vpack.c.b16 %v328, %v327
    %v338 = vpack.c.b16 %v330, %v329
    %347 = vmatprep.subr.bf16.mxu0 0
    %348 = vmatpush1.bf16.msra.mxu0 %v331
    %349 = vmatprep.subr.bf16.mxu0 0
    %350 = vmatpush1.bf16.msra.mxu0 %v332
    %351 = vmatprep.subr.bf16.mxu0 0
    %352 = vmatpush1.bf16.msra.mxu0 %v333
    %353 = vmatprep.subr.bf16.mxu0 0
    %354 = vmatpush1.bf16.msra.mxu0 %v334
    %355 = vmatprep.subr.bf16.mxu0 0
    %356 = vmatpush1.bf16.msra.mxu0 %v335
    %357 = vmatprep.subr.bf16.mxu0 0
    %358 = vmatpush1.bf16.msra.mxu0 %v336
    %359 = vmatprep.subr.bf16.mxu0 0
    %360 = vmatpush1.bf16.msra.mxu0 %v337
    %361 = vmatprep.subr.bf16.mxu0 0
    %362 = vmatpush1.bf16.msra.mxu0 %v338
    %363 = vmatprep.subr.bf16.mxu0 0
    %364 = vmatpush1.bf16.msra.mxu0 0
    %365 = vmatprep.subr.bf16.mxu0 0
    %366 = vmatpush1.bf16.msra.mxu0 0
    %367 = vmatprep.subr.bf16.mxu0 0
    %368 = vmatpush1.bf16.msra.mxu0 0
    %369 = vmatprep.subr.bf16.mxu0 0
    %370 = vmatpush1.bf16.msra.mxu0 0
    %371 = vmatprep.subr.bf16.mxu0 0
    %372 = vmatpush1.bf16.msra.mxu0 0
    %373 = vmatprep.subr.bf16.mxu0 0
    %374 = vmatpush1.bf16.msra.mxu0 0
    %375 = vmatprep.subr.bf16.mxu0 0
    %376 = vmatpush1.bf16.msra.mxu0 0
    %377 = vmatprep.subr.bf16.mxu0 0
    %378 = vmatpush1.bf16.msra.mxu0 0
    %379 = vmatprep.mubr.bf16.mxu0 0
    %380 = vmatmul.mubr.bf16.gmra.mrb[0].mxu0 %v275
    %v381 = vpop.f32.mrb[0].mxu0
    %v382 = vadd.f32 %v297, %v381
    %v383 = vpop.f32.mrb[0].mxu0
    %v384 = vpop.f32.mrb[0].mxu0
    %v385 = vpop.f32.mrb[0].mxu0
    %386 = vdwg.mxu0
    %v387 = vtanh.pop %v382
    %v388 = vmul.f32 %v387, 0.05
    %v389 = vadd.f32 %v50, %v388
    %v390 = vmax.f32 %v389, -1.0
    %v391 = vmin.f32 %v390, 1.0
    %392 = vst.msk [vmem:[#allocation5] sm:$0xff] %vm55, %v391
    // Predicated region
    $region42: #{tpu_custom_call.1} parent=1 // pred_check
      _
    $region43: #{tpu_custom_call.1} parent=1 // pred_check_branch
      %394 = sbr.rel (0) target = $region45
    $region44: #{tpu_custom_call.1} parent=1 // pred_region
      %s396 = ssub.s32 128, 128
      %397 = vsyncadd [#allocation4], %s396
      %s399 = sshll.u32 [#allocation5], 4
      %s400 = int_to_ptr.vmem [resolvable:$true] %s399
      %402 = dma.vmem_to_hbm [thread:$0]  %s400, 128, %s9, [#allocation4]
    $region45: #{tpu_custom_call.1} parent=1 // pred_fallthru
      _
    // Predicated region
    $region46: #{tpu_custom_call.1} parent=1 // pred_check
      _
    $region47: #{tpu_custom_call.1} parent=1 // pred_check_branch
      %404 = sbr.rel (0) target = $region49
    $region48: #{tpu_custom_call.1} parent=1 // pred_region
      %405 = dma.done [#allocation4], 128
    $region49: #{tpu_custom_call.1} parent=1 // pred_fallthru
      _
    %406 = vsyncpa [#allocation3], 1
    %407 = vsyncpa [#allocation4], 1

</llo_original>
